<compile_context>
chip_gen: v7x
topology: tpu7x:2x2x1
jax: 0.10.0
libtpu: 0.0.40
codegen_flags: <defaults>
</compile_context>

<pallas_src>
import math

import jax
import jax.numpy as jnp
from jax.experimental import pallas as pl
from jax.experimental.pallas import tpu as pltpu


_VMEM_LIMIT = 48 * 1024 * 1024  # safe on v5e/v6e (128 MiB) and v7x (64 MiB)


# ----------------------------------------------------------------------------
# Kernel 1: coordinate pooling + squeeze/excite gates (one batch per step).
# ----------------------------------------------------------------------------
def _attn_kernel(x_ref, w1_ref, b1_ref, wh_ref, bh_ref, ww_ref, bw_ref,
                 ah_ref, aw_ref):
    _, C, H, W = x_ref.shape
    x = x_ref[0]                               # (C, H, W)

    # AdaptiveAvgPool2d((None,1)) -> mean over W ; ((1,None)) -> mean over H
    xh = jnp.sum(x, axis=2) * (1.0 / W)        # (C, H)
    xw = jnp.sum(x, axis=1) * (1.0 / H)        # (C, W)

    w1 = w1_ref[...]                           # (mip, C), BN scale pre-folded
    b1 = b1_ref[...]                           # (mip, 1), BN bias  pre-folded

    def excite(pooled, wo, bo):
        y = jnp.dot(w1, pooled, preferred_element_type=jnp.float32) + b1
        y = y * jnp.clip(y + 3.0, 0.0, 6.0) * (1.0 / 6.0)      # Hardswish
        a = jnp.dot(wo, y, preferred_element_type=jnp.float32) + bo
        return jax.nn.sigmoid(a)

    # conv1/bn1/act are pointwise along the pooled (concat) axis, so running
    # the two halves separately equals cat -> conv -> split.
    ah_ref[...] = excite(xh, wh_ref[...], bh_ref[...])[None]   # (1, oup, H)
    aw_ref[...] = excite(xw, ww_ref[...], bw_ref[...])[None]   # (1, oup, W)


# ----------------------------------------------------------------------------
# Kernel 2: out = x * a_h * a_w — pure broadcast multiply, no relayouts.
# ----------------------------------------------------------------------------
def _apply_kernel(x_ref, ah_ref, aw_ref, o_ref):
    # x: (1, tc, th, W); ah: (1, tc, th, 1); aw: (1, tc, 1, W)
    o_ref[...] = x_ref[...] * ah_ref[...] * aw_ref[...]


# ----------------------------------------------------------------------------
# Tile picker for the apply pass: biggest block that fits a VMEM budget while
# keeping the (8, 128)-divisibility / full-dim rule on the last two dims.
# ----------------------------------------------------------------------------
def _pick_apply_tiles(C, H, W, itemsize=4, target_bytes=2 << 20):
    def cands(n):
        out = {n}
        for d in range(8, n, 8):
            if n % d == 0:
                out.add(d)
        return sorted(out, reverse=True)       # biggest first

    for tc in cands(C):
        for th in cands(H):
            if tc * th * W * itemsize <= target_bytes:
                return tc, th
    return cands(C)[-1], cands(H)[-1]


# ----------------------------------------------------------------------------
# Wrapper: NCHW in / NCHW out (matches PyTorch), BN folded in init_params.
# ----------------------------------------------------------------------------
def coord_att(x_nchw, params):
    x = x_nchw.astype(jnp.float32)
    N, C, H, W = x.shape
    mip = params['w1'].shape[0]
    oup = params['wh'].shape[0]
    assert oup == C, "CoordAtt elementwise gate requires oup == inp"

    # --- pass 1: attention gates, grid over batch (parallel) ----------------
    # TODO(synk): for very large feature maps (C*H*W*4 > ~20 MB per image),
    # tile this pass over H with pooled-sum accumulators instead of loading
    # the whole image per grid step.
    ah, aw = pl.pallas_call(
        _attn_kernel,
        out_shape=(jax.ShapeDtypeStruct((N, oup, H), jnp.float32),
                   jax.ShapeDtypeStruct((N, oup, W), jnp.float32)),
        grid=(N,),
        in_specs=[
            pl.BlockSpec((1, C, H, W), lambda n: (n, 0, 0, 0)),
            pl.BlockSpec((mip, C), lambda n: (0, 0)),      # weights stay
            pl.BlockSpec((mip, 1), lambda n: (0, 0)),      # resident across
            pl.BlockSpec((oup, mip), lambda n: (0, 0)),    # grid steps
            pl.BlockSpec((oup, 1), lambda n: (0, 0)),
            pl.BlockSpec((oup, mip), lambda n: (0, 0)),
            pl.BlockSpec((oup, 1), lambda n: (0, 0)),
        ],
        out_specs=(pl.BlockSpec((1, oup, H), lambda n: (n, 0, 0)),
                   pl.BlockSpec((1, oup, W), lambda n: (n, 0, 0))),
        compiler_params=pltpu.CompilerParams(
            dimension_semantics=("parallel",),
            vmem_limit_bytes=_VMEM_LIMIT),
    )(x, params['w1'], params['b1'], params['wh'], params['bh'],
      params['ww'], params['bw'])

    # Tiny reshapes (a few KB) so the apply kernel sees broadcast-ready gates
    # and needs no in-kernel relayout.
    ah4 = ah[:, :, :, None]        # (N, C, H, 1)
    aw4 = aw[:, :, None, :]        # (N, C, 1, W)

    # --- pass 2: apply gates, pipelined grid over (batch, C-tiles, H-tiles) -
    tc, th = _pick_apply_tiles(C, H, W)
    out = pl.pallas_call(
        _apply_kernel,
        out_shape=jax.ShapeDtypeStruct((N, C, H, W), jnp.float32),
        grid=(N, C // tc, H // th),
        in_specs=[
            pl.BlockSpec((1, tc, th, W), lambda n, c, h: (n, c, h, 0)),
            pl.BlockSpec((1, tc, th, 1), lambda n, c, h: (n, c, h, 0)),
            pl.BlockSpec((1, tc, 1, W), lambda n, c, h: (n, c, 0, 0)),
        ],
        out_specs=pl.BlockSpec((1, tc, th, W), lambda n, c, h: (n, c, h, 0)),
        compiler_params=pltpu.CompilerParams(
            dimension_semantics=("parallel", "parallel", "parallel"),
            vmem_limit_bytes=_VMEM_LIMIT),
    )(x, ah4, aw4)
    return out


# ----------------------------------------------------------------------------
# Deterministic parameter construction (inference-mode BN folding).
# Weight layouts match PyTorch 1x1 convs: (out_ch, in_ch).
# ----------------------------------------------------------------------------
def init_params(key, inp, oup, reduction=32, eps=1e-5):
    mip = max(8, inp // reduction)
    ks = jax.random.split(key, 10)

    # conv1 (inp -> mip, 1x1, with bias) + bn1, folded.
    w1 = jax.random.normal(ks[0], (mip, inp), jnp.float32) / math.sqrt(inp)
    b1c = 0.1 * jax.random.normal(ks[1], (mip,), jnp.float32)
    gamma = 1.0 + 0.1 * jax.random.normal(ks[2], (mip,), jnp.float32)
    beta = 0.1 * jax.random.normal(ks[3], (mip,), jnp.float32)
    mean = 0.1 * jax.random.normal(ks[4], (mip,), jnp.float32)
    var = 0.5 + jax.random.uniform(ks[5], (mip,), jnp.float32)
    s = gamma / jnp.sqrt(var + eps)
    b_bn = beta - mean * s
    w1_f = w1 * s[:, None]
    b1_f = b1c * s + b_bn

    # conv_h / conv_w (mip -> oup, 1x1, with bias)
    wh = jax.random.normal(ks[6], (oup, mip), jnp.float32) / math.sqrt(mip)
    bh = 0.1 * jax.random.normal(ks[7], (oup,), jnp.float32)
    ww = jax.random.normal(ks[8], (oup, mip), jnp.float32) / math.sqrt(mip)
    bw = 0.1 * jax.random.normal(ks[9], (oup,), jnp.float32)

    return {
        'w1': w1_f, 'b1': b1_f.reshape(mip, 1),
        'wh': wh, 'bh': bh.reshape(oup, 1),
        'ww': ww, 'bw': bw.reshape(oup, 1),
    }


# ----------------------------------------------------------------------------
# Pure-JAX reference mirroring the PyTorch forward (for a correctness check).
# ----------------------------------------------------------------------------
def reference(x_nchw, p):
    x = x_nchw.astype(jnp.float32)
    N, C, H, W = x.shape
    xh = x.mean(axis=3)                        # (N, C, H)   pool over W
    xw = x.mean(axis=2)                        # (N, C, W)   pool over H
    y = jnp.concatenate([xh, xw], axis=2)      # (N, C, H+W)
    y = jnp.einsum('oc,nck->nok', p['w1'], y) + p['b1']
    y = y * jnp.clip(y + 3.0, 0.0, 6.0) / 6.0  # Hardswish
    yh, yw = y[:, :, :H], y[:, :, H:]
    ah = jax.nn.sigmoid(jnp.einsum('om,nmk->nok', p['wh'], yh) + p['bh'])
    aw = jax.nn.sigmoid(jnp.einsum('om,nmk->nok', p['ww'], yw) + p['bw'])
    return x * ah[:, :, :, None] * aw[:, :, None, :]


if __name__ == "__main__":
    key = jax.random.PRNGKey(0)
    kx, kp = jax.random.split(key)

    # CoordAtt(inp=4, oup=4, reduction=32) -> mip = max(8, 4//32) = 8
    inp = oup = 4
    N, H, W = 2, 16, 16
    x = jax.random.normal(kx, (N, inp, H, W), jnp.float32)   # NCHW like PyTorch
    params = init_params(kp, inp, oup, reduction=32)

    out = jax.block_until_ready(coord_att(x, params))
    assert out.shape == (N, oup, H, W), out.shape

    ref = reference(x, params)
    err = float(jnp.max(jnp.abs(out - ref)))
    assert err < 1e-4, f"max abs err {err}"
    print("KERNEL_OK")
</pallas_src>

<mosaic_0001>
module attributes {stable_mosaic.version = 11 : i64} {
  func.func @_attn_kernel(%arg0: i32, %arg1: memref<1x4x16x16xf32, #tpu.memory_space<vmem>>, %arg2: memref<8x4xf32, #tpu.memory_space<vmem>>, %arg3: memref<8x1xf32, #tpu.memory_space<vmem>>, %arg4: memref<4x8xf32, #tpu.memory_space<vmem>>, %arg5: memref<4x1xf32, #tpu.memory_space<vmem>>, %arg6: memref<4x8xf32, #tpu.memory_space<vmem>>, %arg7: memref<4x1xf32, #tpu.memory_space<vmem>>, %arg8: memref<1x4x16xf32, #tpu.memory_space<vmem>>, %arg9: memref<1x4x16xf32, #tpu.memory_space<vmem>>) attributes {dimension_semantics = [#tpu.dimension_semantics<parallel>], iteration_bounds = array<i64: 2>, scalar_prefetch = 0 : i64, scratch_operands = 0 : i64, tpu.core_type = #tpu.core_type<tc>, window_params = [{transform_indices = @transform_0, window_bounds = array<i64: 1, 4, 16, 16>}, {pipeline_mode = #tpu.pipeline_mode<synchronous>, transform_indices = @transform_1, window_bounds = array<i64: 8, 4>}, {pipeline_mode = #tpu.pipeline_mode<synchronous>, transform_indices = @transform_2, window_bounds = array<i64: 8, 1>}, {pipeline_mode = #tpu.pipeline_mode<synchronous>, transform_indices = @transform_3, window_bounds = array<i64: 4, 8>}, {pipeline_mode = #tpu.pipeline_mode<synchronous>, transform_indices = @transform_4, window_bounds = array<i64: 4, 1>}, {pipeline_mode = #tpu.pipeline_mode<synchronous>, transform_indices = @transform_5, window_bounds = array<i64: 4, 8>}, {pipeline_mode = #tpu.pipeline_mode<synchronous>, transform_indices = @transform_6, window_bounds = array<i64: 4, 1>}, {transform_indices = @transform_7, window_bounds = array<i64: 1, 4, 16>}, {transform_indices = @transform_8, window_bounds = array<i64: 1, 4, 16>}]} {
    %c0 = arith.constant 0 : index
    %c0_0 = arith.constant 0 : index
    %c0_1 = arith.constant 0 : index
    %c0_2 = arith.constant 0 : index
    %0 = vector.load %arg1[%c0, %c0_0, %c0_1, %c0_2] : memref<1x4x16x16xf32, #tpu.memory_space<vmem>>, vector<1x4x16x16xf32>
    %1 = vector.shape_cast %0 : vector<1x4x16x16xf32> to vector<4x16x16xf32>
    %cst = arith.constant dense<0.000000e+00> : vector<4x16xf32>
    %2 = vector.multi_reduction <add>, %1, %cst [2] : vector<4x16x16xf32> to vector<4x16xf32>
    %cst_3 = arith.constant 6.250000e-02 : f32
    %3 = vector.broadcast %cst_3 : f32 to vector<4x16xf32>
    %4 = arith.mulf %2, %3 : vector<4x16xf32>
    %cst_4 = arith.constant dense<0.000000e+00> : vector<4x16xf32>
    %5 = vector.multi_reduction <add>, %1, %cst_4 [1] : vector<4x16x16xf32> to vector<4x16xf32>
    %cst_5 = arith.constant 6.250000e-02 : f32
    %6 = vector.broadcast %cst_5 : f32 to vector<4x16xf32>
    %7 = arith.mulf %5, %6 : vector<4x16xf32>
    %c0_6 = arith.constant 0 : index
    %c0_7 = arith.constant 0 : index
    %8 = vector.load %arg2[%c0_6, %c0_7] : memref<8x4xf32, #tpu.memory_space<vmem>>, vector<8x4xf32>
    %c0_8 = arith.constant 0 : index
    %c0_9 = arith.constant 0 : index
    %9 = vector.load %arg3[%c0_8, %c0_9] : memref<8x1xf32, #tpu.memory_space<vmem>>, vector<8x1xf32>
    %c0_10 = arith.constant 0 : index
    %c0_11 = arith.constant 0 : index
    %10 = vector.load %arg4[%c0_10, %c0_11] : memref<4x8xf32, #tpu.memory_space<vmem>>, vector<4x8xf32>
    %c0_12 = arith.constant 0 : index
    %c0_13 = arith.constant 0 : index
    %11 = vector.load %arg5[%c0_12, %c0_13] : memref<4x1xf32, #tpu.memory_space<vmem>>, vector<4x1xf32>
    %cst_14 = arith.constant dense<0.000000e+00> : vector<8x16xf32>
    %12 = tpu.matmul %8, %4, %cst_14 {dimension_numbers = #tpu.dot_dimension_numbers<[1], [0], [0], [1], [0, 0, 1, 1], [], []>} : vector<8x4xf32>, vector<4x16xf32>, vector<8x16xf32> -> vector<8x16xf32>
    %13 = vector.broadcast %9 : vector<8x1xf32> to vector<8x16xf32>
    %14 = arith.addf %12, %13 : vector<8x16xf32>
    %cst_15 = arith.constant 3.000000e+00 : f32
    %15 = vector.broadcast %cst_15 : f32 to vector<8x16xf32>
    %16 = arith.addf %14, %15 : vector<8x16xf32>
    %cst_16 = arith.constant 0.000000e+00 : f32
    %cst_17 = arith.constant 6.000000e+00 : f32
    %17 = vector.broadcast %cst_16 : f32 to vector<8x16xf32>
    %18 = arith.maximumf %17, %16 : vector<8x16xf32>
    %19 = vector.broadcast %cst_17 : f32 to vector<8x16xf32>
    %20 = arith.minimumf %19, %18 : vector<8x16xf32>
    %21 = arith.mulf %14, %20 : vector<8x16xf32>
    %cst_18 = arith.constant 0.166666672 : f32
    %22 = vector.broadcast %cst_18 : f32 to vector<8x16xf32>
    %23 = arith.mulf %21, %22 : vector<8x16xf32>
    %cst_19 = arith.constant dense<0.000000e+00> : vector<4x16xf32>
    %24 = tpu.matmul %10, %23, %cst_19 {dimension_numbers = #tpu.dot_dimension_numbers<[1], [0], [0], [1], [0, 0, 1, 1], [], []>} : vector<4x8xf32>, vector<8x16xf32>, vector<4x16xf32> -> vector<4x16xf32>
    %25 = vector.broadcast %11 : vector<4x1xf32> to vector<4x16xf32>
    %26 = arith.addf %24, %25 : vector<4x16xf32>
    %27 = arith.negf %26 : vector<4x16xf32>
    %28 = math.exp %27 : vector<4x16xf32>
    %cst_20 = arith.constant 1.000000e+00 : f32
    %29 = vector.broadcast %cst_20 : f32 to vector<4x16xf32>
    %30 = arith.addf %29, %28 : vector<4x16xf32>
    %31 = arith.divf %29, %30 : vector<4x16xf32>
    %32 = vector.shape_cast %31 : vector<4x16xf32> to vector<1x4x16xf32>
    %c0_21 = arith.constant 0 : index
    %c0_22 = arith.constant 0 : index
    %c0_23 = arith.constant 0 : index
    %33 = vector.load %arg8[%c0_21, %c0_22, %c0_23] : memref<1x4x16xf32, #tpu.memory_space<vmem>>, vector<1x4x16xf32>
    tpu.vector_store %arg8[%c0_21, %c0_22, %c0_23], %32 {strides = array<i32>} : memref<1x4x16xf32, #tpu.memory_space<vmem>>, vector<1x4x16xf32>,
    %c0_24 = arith.constant 0 : index
    %c0_25 = arith.constant 0 : index
    %34 = vector.load %arg6[%c0_24, %c0_25] : memref<4x8xf32, #tpu.memory_space<vmem>>, vector<4x8xf32>
    %c0_26 = arith.constant 0 : index
    %c0_27 = arith.constant 0 : index
    %35 = vector.load %arg7[%c0_26, %c0_27] : memref<4x1xf32, #tpu.memory_space<vmem>>, vector<4x1xf32>
    %cst_28 = arith.constant dense<0.000000e+00> : vector<8x16xf32>
    %36 = tpu.matmul %8, %7, %cst_28 {dimension_numbers = #tpu.dot_dimension_numbers<[1], [0], [0], [1], [0, 0, 1, 1], [], []>} : vector<8x4xf32>, vector<4x16xf32>, vector<8x16xf32> -> vector<8x16xf32>
    %37 = vector.broadcast %9 : vector<8x1xf32> to vector<8x16xf32>
    %38 = arith.addf %36, %37 : vector<8x16xf32>
    %cst_29 = arith.constant 3.000000e+00 : f32
    %39 = vector.broadcast %cst_29 : f32 to vector<8x16xf32>
    %40 = arith.addf %38, %39 : vector<8x16xf32>
    %cst_30 = arith.constant 0.000000e+00 : f32
    %cst_31 = arith.constant 6.000000e+00 : f32
    %41 = vector.broadcast %cst_30 : f32 to vector<8x16xf32>
    %42 = arith.maximumf %41, %40 : vector<8x16xf32>
    %43 = vector.broadcast %cst_31 : f32 to vector<8x16xf32>
    %44 = arith.minimumf %43, %42 : vector<8x16xf32>
    %45 = arith.mulf %38, %44 : vector<8x16xf32>
    %cst_32 = arith.constant 0.166666672 : f32
    %46 = vector.broadcast %cst_32 : f32 to vector<8x16xf32>
    %47 = arith.mulf %45, %46 : vector<8x16xf32>
    %cst_33 = arith.constant dense<0.000000e+00> : vector<4x16xf32>
    %48 = tpu.matmul %34, %47, %cst_33 {dimension_numbers = #tpu.dot_dimension_numbers<[1], [0], [0], [1], [0, 0, 1, 1], [], []>} : vector<4x8xf32>, vector<8x16xf32>, vector<4x16xf32> -> vector<4x16xf32>
    %49 = vector.broadcast %35 : vector<4x1xf32> to vector<4x16xf32>
    %50 = arith.addf %48, %49 : vector<4x16xf32>
    %51 = arith.negf %50 : vector<4x16xf32>
    %52 = math.exp %51 : vector<4x16xf32>
    %cst_34 = arith.constant 1.000000e+00 : f32
    %53 = vector.broadcast %cst_34 : f32 to vector<4x16xf32>
    %54 = arith.addf %53, %52 : vector<4x16xf32>
    %55 = arith.divf %53, %54 : vector<4x16xf32>
    %56 = vector.shape_cast %55 : vector<4x16xf32> to vector<1x4x16xf32>
    %c0_35 = arith.constant 0 : index
    %c0_36 = arith.constant 0 : index
    %c0_37 = arith.constant 0 : index
    %57 = vector.load %arg9[%c0_35, %c0_36, %c0_37] : memref<1x4x16xf32, #tpu.memory_space<vmem>>, vector<1x4x16xf32>
    tpu.vector_store %arg9[%c0_35, %c0_36, %c0_37], %56 {strides = array<i32>} : memref<1x4x16xf32, #tpu.memory_space<vmem>>, vector<1x4x16xf32>,
    return
  }
  func.func @transform_0(%arg0: i32) -> (i32, i32, i32, i32) {
    %c0_i32 = arith.constant 0 : i32
    %c0_i32_0 = arith.constant 0 : i32
    %c0_i32_1 = arith.constant 0 : i32
    %c0_i32_2 = arith.constant 0 : i32
    return %arg0, %c0_i32, %c0_i32_0, %c0_i32_1 : i32, i32, i32, i32
  }
  func.func @transform_1(%arg0: i32) -> (i32, i32) {
    %c0_i32 = arith.constant 0 : i32
    %c0_i32_0 = arith.constant 0 : i32
    %c0_i32_1 = arith.constant 0 : i32
    return %c0_i32, %c0_i32_0 : i32, i32
  }
  func.func @transform_2(%arg0: i32) -> (i32, i32) {
    %c0_i32 = arith.constant 0 : i32
    %c0_i32_0 = arith.constant 0 : i32
    %c0_i32_1 = arith.constant 0 : i32
    return %c0_i32, %c0_i32_0 : i32, i32
  }
  func.func @transform_3(%arg0: i32) -> (i32, i32) {
    %c0_i32 = arith.constant 0 : i32
    %c0_i32_0 = arith.constant 0 : i32
    %c0_i32_1 = arith.constant 0 : i32
    return %c0_i32, %c0_i32_0 : i32, i32
  }
  func.func @transform_4(%arg0: i32) -> (i32, i32) {
    %c0_i32 = arith.constant 0 : i32
    %c0_i32_0 = arith.constant 0 : i32
    %c0_i32_1 = arith.constant 0 : i32
    return %c0_i32, %c0_i32_0 : i32, i32
  }
  func.func @transform_5(%arg0: i32) -> (i32, i32) {
    %c0_i32 = arith.constant 0 : i32
    %c0_i32_0 = arith.constant 0 : i32
    %c0_i32_1 = arith.constant 0 : i32
    return %c0_i32, %c0_i32_0 : i32, i32
  }
  func.func @transform_6(%arg0: i32) -> (i32, i32) {
    %c0_i32 = arith.constant 0 : i32
    %c0_i32_0 = arith.constant 0 : i32
    %c0_i32_1 = arith.constant 0 : i32
    return %c0_i32, %c0_i32_0 : i32, i32
  }
  func.func @transform_7(%arg0: i32) -> (i32, i32, i32) {
    %c0_i32 = arith.constant 0 : i32
    %c0_i32_0 = arith.constant 0 : i32
    %c0_i32_1 = arith.constant 0 : i32
    return %arg0, %c0_i32, %c0_i32_0 : i32, i32, i32
  }
  func.func @transform_8(%arg0: i32) -> (i32, i32, i32) {
    %c0_i32 = arith.constant 0 : i32
    %c0_i32_0 = arith.constant 0 : i32
    %c0_i32_1 = arith.constant 0 : i32
    return %arg0, %c0_i32, %c0_i32_0 : i32, i32, i32
  }
}

</mosaic_0001>

<llo_original>
// kernel: tpu_custom_call.1
$region0: #{tpu_custom_call.1}
  #allocation0 [shape = 'u32[]', space=smem, size = 0x4, offset = 0x4, fixed_abs, tag = 'smem constant byte address 0x4 - core index']
  #allocation1 [shape = 'u32[144,128]{1,0:T(1,128)}', space=vmem, size = 0x12000, scoped, tag = 'internal scratch']
  %s0 = inlined_call_operand.hbm [shape: f32[2,4,16,16], index: 0, kind: input, shape index: {}]
  %s1 = inlined_call_operand.vmem [shape: f32[8,4], index: 1, kind: input, shape index: {}]
  %s2 = inlined_call_operand.vmem [shape: f32[8,1], index: 2, kind: input, shape index: {}]
  %s3 = inlined_call_operand.vmem [shape: f32[4,8], index: 3, kind: input, shape index: {}]
  %s4 = inlined_call_operand.vmem [shape: f32[4,1], index: 4, kind: input, shape index: {}]
  %s5 = inlined_call_operand.vmem [shape: f32[4,8], index: 5, kind: input, shape index: {}]
  %s6 = inlined_call_operand.vmem [shape: f32[4,1], index: 6, kind: input, shape index: {}]
  %s7 = inlined_call_operand.hbm [shape: f32[2,4,16], index: 7, kind: output, shape index: {0}]
  %s8 = inlined_call_operand.hbm [shape: f32[2,4,16], index: 8, kind: output, shape index: {1}]
  %9 = xla_tuple %s7, %s8
  %s10 = sld [smem:[#allocation0]]
  $region73: #{tpu_custom_call.1} parent=0
    _
  %s12 = ssub.s32 1, %s10
  %s13 = scalar_select 0, %s12, %s10
  $region1: #{tpu_custom_call.1} parent=0
    #allocation2 [shape = 'u8[65536]{0}', space=vmem, size = 0x10000, scoped, tag = 'input window, operand 0']
    #allocation3 [shape = 's32[2]{0}', space=sflag, size = 0x8, scoped, tag = 'scoped memory for tpu_custom_call.1']
    #allocation4 [shape = 's32[2]{0}', space=sflag, size = 0x8, scoped, tag = 'scoped memory for tpu_custom_call.1']
    #allocation5 [shape = 'u8[4096]{0}', space=vmem, size = 0x1000, scoped, tag = 'output window, operand 0']
    #allocation6 [shape = 'u8[4096]{0}', space=vmem, size = 0x1000, scoped, tag = 'output window, operand 1']
    #allocation7 [shape = 's32[2]{0}', space=sflag, size = 0x8, scoped, tag = 'scoped memory for tpu_custom_call.1']
    %14 = vsyncpa [#allocation3], 0
    %s15 = scalar_lea.sflag [#allocation3], 1
    %16 = vsyncpa %s15, 0
    %17 = vsyncpa [#allocation4], 0
    %s18 = scalar_lea.sflag [#allocation4], 1
    %19 = vsyncpa %s18, 0
    %20 = vsyncpa [#allocation7], 0
    %s21 = scalar_lea.sflag [#allocation7], 1
    %22 = vsyncpa %s21, 0
    loop: start=0, step=1, limit=4
    $region2: #{tpu_custom_call.1} parent=1 // loop_pre_header
      _
    $region3: #{tpu_custom_call.1} parent=1 // loop_header
      %s24 = sphi 0, %s28
      %p25 = scmp.ge.s32.totalorder %s24, 4
      %s34 = sphi 0, %s36
      %s37 = sphi 0, %s34
      %s38 = sphi 0, %s37
      %s54 = sphi 0, %s38
      %s58 = sphi 0, %s58
      %s60 = sphi 0, %s58
      %s61 = sphi 0, %s60
      %s75 = sphi 0, %s61
      %s79 = sphi 0, %s79
      %s81 = sphi 0, %s79
      %s82 = sphi 0, %s81
      %s96 = sphi 0, %s82
      %s100 = sphi 0, %s100
      %s102 = sphi 0, %s100
      %s103 = sphi 0, %s102
      %s117 = sphi 0, %s103
      %s121 = sphi 0, %s121
      %s123 = sphi 0, %s121
      %s124 = sphi 0, %s123
      %s138 = sphi 0, %s124
      %s142 = sphi 0, %s142
      %s144 = sphi 0, %s142
      %s145 = sphi 0, %s144
      %s159 = sphi 0, %s145
      %s163 = sphi 0, %s163
      %s165 = sphi 0, %s163
      %s166 = sphi 0, %s165
      %s180 = sphi 0, %s166
      %s186 = sphi 0, %s188
      %s189 = sphi 0, %s186
      %s190 = sphi 0, %s189
      %s206 = sphi 0, %s190
      %s212 = sphi 0, %s214
      %s215 = sphi 0, %s212
      %s216 = sphi 0, %s215
      %s232 = sphi 0, %s216
    $region4: #{tpu_custom_call.1} parent=1 // loop_header_branch
      %27 = sbr.rel (%p25) target = $region8
    $region5: #{tpu_custom_call.1} parent=1 // loop_body
      %s29 = ssub.s32 %s24, 1
      %s30 = ssub.s32 %s24, 2
      %s31 = sadd.s32 %s24, 1
      %s32 = ssub.s32 %s24, %s31
      %p33 = scmp.eq.s32.totalorder %s32, 0
      %s35 = sadd.s32 %s34, 1
      %s36 = scalar_select %p33, %s34, %s35
      %p39 = pneg %p33
      %p40 = scmp.eq.s32.totalorder %s24, 1
      %p41 = por %p39, %p40
      %p42 = scmp.ne.s32.totalorder %s34, %s37
      %p43 = scmp.eq.s32.totalorder %s24, 0
      %p44 = por %p42, %p43
      %p45 = scmp.ne.s32.totalorder %s34, %s37
      %p46 = scmp.eq.s32.totalorder %s29, 1
      %p47 = por %p45, %p46
      %p48 = scmp.ne.s32.totalorder %s37, %s38
      %p49 = scmp.eq.s32.totalorder %s29, 0
      %p50 = por %p48, %p49
      %p51 = scmp.ne.s32.totalorder %s37, %s38
      %p52 = scmp.eq.s32.totalorder %s30, 1
      %p53 = por %p51, %p52
      %p55 = scmp.ne.s32.totalorder %s38, %s54
      %p56 = scmp.eq.s32.totalorder %s30, 0
      %p57 = por %p55, %p56
      %s59 = sadd.s32 %s58, 1
      %p62 = scmp.eq.s32.totalorder %s24, 1
      %p63 = scmp.ne.s32.totalorder %s58, %s60
      %p64 = scmp.eq.s32.totalorder %s24, 0
      %p65 = por %p63, %p64
      %p66 = scmp.ne.s32.totalorder %s58, %s60
      %p67 = scmp.eq.s32.totalorder %s29, 1
      %p68 = por %p66, %p67
      %p69 = scmp.ne.s32.totalorder %s60, %s61
      %p70 = scmp.eq.s32.totalorder %s29, 0
      %p71 = por %p69, %p70
      %p72 = scmp.ne.s32.totalorder %s60, %s61
      %p73 = scmp.eq.s32.totalorder %s30, 1
      %p74 = por %p72, %p73
      %p76 = scmp.ne.s32.totalorder %s61, %s75
      %p77 = scmp.eq.s32.totalorder %s30, 0
      %p78 = por %p76, %p77
      %s80 = sadd.s32 %s79, 1
      %p83 = scmp.eq.s32.totalorder %s24, 1
      %p84 = scmp.ne.s32.totalorder %s79, %s81
      %p85 = scmp.eq.s32.totalorder %s24, 0
      %p86 = por %p84, %p85
      %p87 = scmp.ne.s32.totalorder %s79, %s81
      %p88 = scmp.eq.s32.totalorder %s29, 1
      %p89 = por %p87, %p88
      %p90 = scmp.ne.s32.totalorder %s81, %s82
      %p91 = scmp.eq.s32.totalorder %s29, 0
      %p92 = por %p90, %p91
      %p93 = scmp.ne.s32.totalorder %s81, %s82
      %p94 = scmp.eq.s32.totalorder %s30, 1
      %p95 = por %p93, %p94
      %p97 = scmp.ne.s32.totalorder %s82, %s96
      %p98 = scmp.eq.s32.totalorder %s30, 0
      %p99 = por %p97, %p98
      %s101 = sadd.s32 %s100, 1
      %p104 = scmp.eq.s32.totalorder %s24, 1
      %p105 = scmp.ne.s32.totalorder %s100, %s102
      %p106 = scmp.eq.s32.totalorder %s24, 0
      %p107 = por %p105, %p106
      %p108 = scmp.ne.s32.totalorder %s100, %s102
      %p109 = scmp.eq.s32.totalorder %s29, 1
      %p110 = por %p108, %p109
      %p111 = scmp.ne.s32.totalorder %s102, %s103
      %p112 = scmp.eq.s32.totalorder %s29, 0
      %p113 = por %p111, %p112
      %p114 = scmp.ne.s32.totalorder %s102, %s103
      %p115 = scmp.eq.s32.totalorder %s30, 1
      %p116 = por %p114, %p115
      %p118 = scmp.ne.s32.totalorder %s103, %s117
      %p119 = scmp.eq.s32.totalorder %s30, 0
      %p120 = por %p118, %p119
      %s122 = sadd.s32 %s121, 1
      %p125 = scmp.eq.s32.totalorder %s24, 1
      %p126 = scmp.ne.s32.totalorder %s121, %s123
      %p127 = scmp.eq.s32.totalorder %s24, 0
      %p128 = por %p126, %p127
      %p129 = scmp.ne.s32.totalorder %s121, %s123
      %p130 = scmp.eq.s32.totalorder %s29, 1
      %p131 = por %p129, %p130
      %p132 = scmp.ne.s32.totalorder %s123, %s124
      %p133 = scmp.eq.s32.totalorder %s29, 0
      %p134 = por %p132, %p133
      %p135 = scmp.ne.s32.totalorder %s123, %s124
      %p136 = scmp.eq.s32.totalorder %s30, 1
      %p137 = por %p135, %p136
      %p139 = scmp.ne.s32.totalorder %s124, %s138
      %p140 = scmp.eq.s32.totalorder %s30, 0
      %p141 = por %p139, %p140
      %s143 = sadd.s32 %s142, 1
      %p146 = scmp.eq.s32.totalorder %s24, 1
      %p147 = scmp.ne.s32.totalorder %s142, %s144
      %p148 = scmp.eq.s32.totalorder %s24, 0
      %p149 = por %p147, %p148
      %p150 = scmp.ne.s32.totalorder %s142, %s144
      %p151 = scmp.eq.s32.totalorder %s29, 1
      %p152 = por %p150, %p151
      %p153 = scmp.ne.s32.totalorder %s144, %s145
      %p154 = scmp.eq.s32.totalorder %s29, 0
      %p155 = por %p153, %p154
      %p156 = scmp.ne.s32.totalorder %s144, %s145
      %p157 = scmp.eq.s32.totalorder %s30, 1
      %p158 = por %p156, %p157
      %p160 = scmp.ne.s32.totalorder %s145, %s159
      %p161 = scmp.eq.s32.totalorder %s30, 0
      %p162 = por %p160, %p161
      %s164 = sadd.s32 %s163, 1
      %p167 = scmp.eq.s32.totalorder %s24, 1
      %p168 = scmp.ne.s32.totalorder %s163, %s165
      %p169 = scmp.eq.s32.totalorder %s24, 0
      %p170 = por %p168, %p169
      %p171 = scmp.ne.s32.totalorder %s163, %s165
      %p172 = scmp.eq.s32.totalorder %s29, 1
      %p173 = por %p171, %p172
      %p174 = scmp.ne.s32.totalorder %s165, %s166
      %p175 = scmp.eq.s32.totalorder %s29, 0
      %p176 = por %p174, %p175
      %p177 = scmp.ne.s32.totalorder %s165, %s166
      %p178 = scmp.eq.s32.totalorder %s30, 1
      %p179 = por %p177, %p178
      %p181 = scmp.ne.s32.totalorder %s166, %s180
      %p182 = scmp.eq.s32.totalorder %s30, 0
      %p183 = por %p181, %p182
      %s184 = ssub.s32 %s24, %s31
      %p185 = scmp.eq.s32.totalorder %s184, 0
      %s187 = sadd.s32 %s186, 1
      %s188 = scalar_select %p185, %s186, %s187
      %p191 = pneg %p185
      %p192 = scmp.eq.s32.totalorder %s24, 1
      %p193 = por %p191, %p192
      %p194 = scmp.ne.s32.totalorder %s186, %s189
      %p195 = scmp.eq.s32.totalorder %s24, 0
      %p196 = por %p194, %p195
      %p197 = scmp.ne.s32.totalorder %s186, %s189
      %p198 = scmp.eq.s32.totalorder %s29, 1
      %p199 = por %p197, %p198
      %p200 = scmp.ne.s32.totalorder %s189, %s190
      %p201 = scmp.eq.s32.totalorder %s29, 0
      %p202 = por %p200, %p201
      %p203 = scmp.ne.s32.totalorder %s189, %s190
      %p204 = scmp.eq.s32.totalorder %s30, 1
      %p205 = por %p203, %p204
      %p207 = scmp.ne.s32.totalorder %s190, %s206
      %p208 = scmp.eq.s32.totalorder %s30, 0
      %p209 = por %p207, %p208
      %s210 = ssub.s32 %s24, %s31
      %p211 = scmp.eq.s32.totalorder %s210, 0
      %s213 = sadd.s32 %s212, 1
      %s214 = scalar_select %p211, %s212, %s213
      %p217 = pneg %p211
      %p218 = scmp.eq.s32.totalorder %s24, 1
      %p219 = por %p217, %p218
      %p220 = scmp.ne.s32.totalorder %s212, %s215
      %p221 = scmp.eq.s32.totalorder %s24, 0
      %p222 = por %p220, %p221
      %p223 = scmp.ne.s32.totalorder %s212, %s215
      %p224 = scmp.eq.s32.totalorder %s29, 1
      %p225 = por %p223, %p224
      %p226 = scmp.ne.s32.totalorder %s215, %s216
      %p227 = scmp.eq.s32.totalorder %s29, 0
      %p228 = por %p226, %p227
      %p229 = scmp.ne.s32.totalorder %s215, %s216
      %p230 = scmp.eq.s32.totalorder %s30, 1
      %p231 = por %p229, %p230
      %p233 = scmp.ne.s32.totalorder %s216, %s232
      %p234 = scmp.eq.s32.totalorder %s30, 0
      %p235 = por %p233, %p234
      %p236 = scmp.le.s32.totalorder 1, %s24
      %p237 = scmp.lt.s32.totalorder %s24, 3
      %p238 = pnand %p236, %p237
      %p239 = pneg %p238
      // Predicated region
      $region9: #{tpu_custom_call.1} parent=5 // pred_check
        _
      $region10: #{tpu_custom_call.1} parent=5 // pred_check_branch
        %241 = sbr.rel (%p238) target = $region12
      $region11: #{tpu_custom_call.1} parent=5 // pred_region
        %s242 = ssub.s32 %s24, 1
        // Predicated region
        $region13: #{tpu_custom_call.1} parent=11 // pred_check
          %p243 = pneg %p71
        $region14: #{tpu_custom_call.1} parent=11 // pred_check_branch
          %245 = sbr.rel (%p243) target = $region16
        $region15: #{tpu_custom_call.1} parent=11 // pred_region
          _
        $region16: #{tpu_custom_call.1} parent=11 // pred_fallthru
          _
        // Predicated region
        $region17: #{tpu_custom_call.1} parent=11 // pred_check
          %p246 = pneg %p92
        $region18: #{tpu_custom_call.1} parent=11 // pred_check_branch
          %248 = sbr.rel (%p246) target = $region20
        $region19: #{tpu_custom_call.1} parent=11 // pred_region
          _
        $region20: #{tpu_custom_call.1} parent=11 // pred_fallthru
          _
        // Predicated region
        $region21: #{tpu_custom_call.1} parent=11 // pred_check
          %p249 = pneg %p113
        $region22: #{tpu_custom_call.1} parent=11 // pred_check_branch
          %251 = sbr.rel (%p249) target = $region24
        $region23: #{tpu_custom_call.1} parent=11 // pred_region
          _
        $region24: #{tpu_custom_call.1} parent=11 // pred_fallthru
          _
        // Predicated region
        $region25: #{tpu_custom_call.1} parent=11 // pred_check
          %p252 = pneg %p134
        $region26: #{tpu_custom_call.1} parent=11 // pred_check_branch
          %254 = sbr.rel (%p252) target = $region28
        $region27: #{tpu_custom_call.1} parent=11 // pred_region
          _
        $region28: #{tpu_custom_call.1} parent=11 // pred_fallthru
          _
        // Predicated region
        $region29: #{tpu_custom_call.1} parent=11 // pred_check
          %p255 = pneg %p155
        $region30: #{tpu_custom_call.1} parent=11 // pred_check_branch
          %257 = sbr.rel (%p255) target = $region32
        $region31: #{tpu_custom_call.1} parent=11 // pred_region
          _
        $region32: #{tpu_custom_call.1} parent=11 // pred_fallthru
          _
        // Predicated region
        $region33: #{tpu_custom_call.1} parent=11 // pred_check
          %p258 = pneg %p176
        $region34: #{tpu_custom_call.1} parent=11 // pred_check_branch
          %260 = sbr.rel (%p258) target = $region36
        $region35: #{tpu_custom_call.1} parent=11 // pred_region
          _
        $region36: #{tpu_custom_call.1} parent=11 // pred_fallthru
          _
      $region12: #{tpu_custom_call.1} parent=5 // pred_fallthru
        _
      %p261 = scmp.lt.s32.totalorder %s24, 2
      // Predicated region
      $region37: #{tpu_custom_call.1} parent=5 // pred_check
        %p262 = pneg %p261
      $region38: #{tpu_custom_call.1} parent=5 // pred_check_branch
        %264 = sbr.rel (%p262) target = $region40
      $region39: #{tpu_custom_call.1} parent=5 // pred_region
        // Predicated region
        $region41: #{tpu_custom_call.1} parent=39 // pred_check
          %p265 = pneg %p44
        $region42: #{tpu_custom_call.1} parent=39 // pred_check_branch
          %267 = sbr.rel (%p265) target = $region44
        $region43: #{tpu_custom_call.1} parent=39 // pred_region
          %s268 = sand.u32 %s34, 1
          %s269 = scalar_lea.sflag [#allocation3], %s268
          %s270 = sand.u32 %s34, 1
          %s271 = smul.addr %s270, 64
          %s272 = scalar_lea.vmem [#allocation2], %s271
          %s274 = ssub.s32 1024, 1024
          %275 = vsyncadd %s269, %s274
          %s276 = smul.addr %s24, 8
          %s277 = smul.addr %s276, 128
          %s278 = scalar_lea.hbm %s0, %s277
          %s279 = sshll.u32 %s272, 4
          %s280 = int_to_ptr.vmem [resolvable:$true] %s279
          %285 = dma.hbm_to_vmem [thread:$0]  %s278, 1024, %s280, %s269, 128, 128, 8
        $region44: #{tpu_custom_call.1} parent=39 // pred_fallthru
          _
      $region40: #{tpu_custom_call.1} parent=5 // pred_fallthru
        _
      %p286 = scmp.le.s32.totalorder 1, %s24
      %p287 = scmp.lt.s32.totalorder %s24, 3
      %p288 = pnand %p286, %p287
      %p289 = pneg %p288
      // Predicated region
      $region45: #{tpu_custom_call.1} parent=5 // pred_check
        _
      $region46: #{tpu_custom_call.1} parent=5 // pred_check_branch
        %291 = sbr.rel (%p288) target = $region48
      $region47: #{tpu_custom_call.1} parent=5 // pred_region
        %s292 = ssub.s32 %s24, 1
        %s293 = sand.u32 %s37, 1
        %s294 = scalar_lea.sflag [#allocation3], %s293
        %s295 = sand.u32 %s37, 1
        %s296 = smul.addr %s295, 64
        %s297 = scalar_lea.vmem [#allocation2], %s296
        // Predicated region
        $region49: #{tpu_custom_call.1} parent=47 // pred_check
          %p298 = pneg %p50
        $region50: #{tpu_custom_call.1} parent=47 // pred_check_branch
          %300 = sbr.rel (%p298) target = $region52
        $region51: #{tpu_custom_call.1} parent=47 // pred_region
          %301 = dma.done %s294, 1024
        $region52: #{tpu_custom_call.1} parent=47 // pred_fallthru
          _
        %s302 = sand.u32 %s37, 1
        %s303 = scalar_lea.sflag [#allocation3], %s302
        %s304 = sand.u32 %s37, 1
        %s305 = smul.addr %s304, 64
        %s306 = scalar_lea.vmem [#allocation2], %s305
        %p307 = pneg %p50
        %p308 = pneg %p47
        %p309 = pneg %p71
        %p310 = pneg %p68
        %p311 = pneg %p92
        %p312 = pneg %p89
        %p313 = pneg %p113
        %p314 = pneg %p110
        %p315 = pneg %p134
        %p316 = pneg %p131
        %p317 = pneg %p155
        %p318 = pneg %p152
        %p319 = pneg %p176
        %p320 = pneg %p173
        %p321 = pneg %p202
        %p322 = pneg %p199
        %s323 = sand.u32 %s189, 1
        %s324 = scalar_lea.sflag [#allocation4], %s323
        %s325 = sand.u32 %s189, 1
        %s326 = smul.addr %s325, 4
        %s327 = scalar_lea.vmem [#allocation5], %s326
        %p328 = pneg %p228
        %p329 = pneg %p225
        %s330 = sand.u32 %s215, 1
        %s331 = scalar_lea.sflag [#allocation7], %s330
        %s332 = sand.u32 %s215, 1
        %s333 = smul.addr %s332, 4
        %s334 = scalar_lea.vmem [#allocation6], %s333
        %v335 = vld [vmem:[%s297] sm:$0xff]
        %v336 = vld [vmem:[%s297 + $0x8] sm:$0xff]
        %v337 = vld [vmem:[%s297 + $0x10] sm:$0xff]
        %v338 = vld [vmem:[%s297 + $0x18] sm:$0xff]
        %v339 = vld [vmem:[%s297 + $0x20] sm:$0xff]
        %v340 = vld [vmem:[%s297 + $0x28] sm:$0xff]
        %v341 = vld [vmem:[%s297 + $0x30] sm:$0xff]
        %v342 = vld [vmem:[%s297 + $0x38] sm:$0xff]
        %vm343 = vcmask 130048
        %v344 = vsel %vm343, %v335, 0.0
        %345 = vadd.xlane.f32.xlu0 %v344
        %v346 = vpop.xlane.xlu0 %345
        %v347 = vsel %vm343, %v336, 0.0
        %348 = vadd.xlane.f32.xlu0 %v347
        %v349 = vpop.xlane.xlu0 %348
        %v350 = vsel %vm343, %v337, 0.0
        %351 = vadd.xlane.f32.xlu0 %v350
        %v352 = vpop.xlane.xlu0 %351
        %v353 = vsel %vm343, %v338, 0.0
        %354 = vadd.xlane.f32.xlu0 %v353
        %v355 = vpop.xlane.xlu0 %354
        %v356 = vsel %vm343, %v339, 0.0
        %357 = vadd.xlane.f32.xlu0 %v356
        %v358 = vpop.xlane.xlu0 %357
        %v359 = vsel %vm343, %v340, 0.0
        %360 = vadd.xlane.f32.xlu0 %v359
        %v361 = vpop.xlane.xlu0 %360
        %v362 = vsel %vm343, %v341, 0.0
        %363 = vadd.xlane.f32.xlu0 %v362
        %v364 = vpop.xlane.xlu0 %363
        %v365 = vsel %vm343, %v342, 0.0
        %366 = vadd.xlane.f32.xlu0 %v365
        %v367 = vpop.xlane.xlu0 %366
        %v368 = vmul.f32 %v346, 0.0625
        %v369 = vmul.f32 %v349, 0.0625
        %v370 = vmul.f32 %v352, 0.0625
        %v371 = vmul.f32 %v355, 0.0625
        %v372 = vmul.f32 %v358, 0.0625
        %v373 = vmul.f32 %v361, 0.0625
        %v374 = vmul.f32 %v364, 0.0625
        %v375 = vmul.f32 %v367, 0.0625
        %v376 = vadd.f32 %v344, %v347
        %v377 = vrot.slane %v376, 4
        %v378 = vadd.f32 %v376, %v377
        %v379 = vrot.slane %v378, 2
        %v380 = vadd.f32 %v378, %v379
        %v381 = vrot.slane %v380, 1
        %v382 = vadd.f32 %v380, %v381
        %v383 = vadd.f32 %v350, %v353
        %v384 = vrot.slane %v383, 4
        %v385 = vadd.f32 %v383, %v384
        %v386 = vrot.slane %v385, 2
        %v387 = vadd.f32 %v385, %v386
        %v388 = vrot.slane %v387, 1
        %v389 = vadd.f32 %v387, %v388
        %v390 = vadd.f32 %v356, %v359
        %v391 = vrot.slane %v390, 4
        %v392 = vadd.f32 %v390, %v391
        %v393 = vrot.slane %v392, 2
        %v394 = vadd.f32 %v392, %v393
        %v395 = vrot.slane %v394, 1
        %v396 = vadd.f32 %v394, %v395
        %v397 = vadd.f32 %v362, %v365
        %v398 = vrot.slane %v397, 4
        %v399 = vadd.f32 %v397, %v398
        %v400 = vrot.slane %v399, 2
        %v401 = vadd.f32 %v399, %v400
        %v402 = vrot.slane %v401, 1
        %v403 = vadd.f32 %v401, %v402
        %v404 = vmul.f32 %v382, 0.0625
        %v405 = vmul.f32 %v389, 0.0625
        %v406 = vmul.f32 %v396, 0.0625
        %v407 = vmul.f32 %v403, 0.0625
        %v408 = vld [vmem:[%s1] sm:$0xff]
        %v409 = vld [vmem:[%s2] sm:$0xff]
        %v410 = vld [vmem:[%s3] sm:$0xf]
        %v411 = vld [vmem:[%s4] sm:$0xf]
        %413 = vset.pattern.permute.xlu0 0
        %414 = vperm.xlu0 %413, %v409
        %v415 = vpop.permute.xlu0 %414
        %v425 = vlaneseq
        %v426 = vand.u32 %v425, 127
        %v427 = vlaneseq
        %v428 = vshrl.u32 %v427, 7
        %v429 = vsub.s32 %v426, %v428
        %v430 = vrot.slane %v368, %v429
        %v431 = vadd.s32 %v426, 4294967288
        %v432 = vlaneseq
        %v433 = vshrl.u32 %v432, 7
        %v434 = vsub.s32 %v431, %v433
        %v435 = vrot.slane %v369, %v434
        %vm436 = vcmask 130112
        %v437 = vsel %vm436, %v435, %v430
        %v438 = vlaneseq
        %v439 = vshrl.u32 %v438, 7
        %v440 = vsub.s32 %v426, %v439
        %v441 = vrot.slane %v370, %v440
        %v442 = vlaneseq
        %v443 = vshrl.u32 %v442, 7
        %v444 = vsub.s32 %v431, %v443
        %v445 = vrot.slane %v371, %v444
        %v446 = vsel %vm436, %v445, %v441
        %v447 = vlaneseq
        %v448 = vshrl.u32 %v447, 7
        %v449 = vsub.s32 %v426, %v448
        %v450 = vrot.slane %v372, %v449
        %v451 = vlaneseq
        %v452 = vshrl.u32 %v451, 7
        %v453 = vsub.s32 %v431, %v452
        %v454 = vrot.slane %v373, %v453
        %v455 = vsel %vm436, %v454, %v450
        %v456 = vlaneseq
        %v457 = vshrl.u32 %v456, 7
        %v458 = vsub.s32 %v426, %v457
        %v459 = vrot.slane %v374, %v458
        %v460 = vlaneseq
        %v461 = vshrl.u32 %v460, 7
        %v462 = vsub.s32 %v431, %v461
        %v463 = vrot.slane %v375, %v462
        %v464 = vsel %vm436, %v463, %v459
        %vm465 = vcmask 1041409
        %v466 = vsel %vm465, %v446, %v437
        %vm467 = vcmask 1042434
        %v468 = vsel %vm467, %v455, %v466
        %vm469 = vcmask 1043459
        %v470 = vsel %vm469, %v464, %v468
        %vm471 = vcmask 31744
        %v473 = vsel %vm471, %v408, 0
        %vm475 = vcmask 1043456
        %v476 = vsel %vm475, %v470, 0
        %478 = vmatprep.subr.mxu0 0.0
        %479 = vmatpush1.msra.mxu0 %v476
        %480 = vmatprep.subr.mxu0 0.0
        %481 = vmatpush1.msra.mxu0 0.0
        %482 = vmatprep.subr.mxu0 0.0
        %483 = vmatpush1.msra.mxu0 0.0
        %484 = vmatprep.subr.mxu0 0.0
        %485 = vmatpush1.msra.mxu0 0.0
        %486 = vmatprep.subr.mxu0 0.0
        %487 = vmatpush1.msra.mxu0 0.0
        %488 = vmatprep.subr.mxu0 0.0
        %489 = vmatpush1.msra.mxu0 0.0
        %490 = vmatprep.subr.mxu0 0.0
        %491 = vmatpush1.msra.mxu0 0.0
        %492 = vmatprep.subr.mxu0 0.0
        %493 = vmatpush1.msra.mxu0 0.0
        %494 = vmatprep.subr.mxu0 0.0
        %495 = vmatpush1.msra.mxu0 0.0
        %496 = vmatprep.subr.mxu0 0.0
        %497 = vmatpush1.msra.mxu0 0.0
        %498 = vmatprep.subr.mxu0 0.0
        %499 = vmatpush1.msra.mxu0 0.0
        %500 = vmatprep.subr.mxu0 0.0
        %501 = vmatpush1.msra.mxu0 0.0
        %502 = vmatprep.subr.mxu0 0.0
        %503 = vmatpush1.msra.mxu0 0.0
        %504 = vmatprep.subr.mxu0 0.0
        %505 = vmatpush1.msra.mxu0 0.0
        %506 = vmatprep.subr.mxu0 0.0
        %507 = vmatpush1.msra.mxu0 0.0
        %508 = vmatprep.subr.mxu0 0.0
        %509 = vmatpush1.msra.mxu0 0.0
        %510 = vmatprep.subr.mxu0 0.0
        %511 = vmatpush1.msra.mxu0 0.0
        %512 = vmatprep.subr.mxu0 0.0
        %513 = vmatpush1.msra.mxu0 0.0
        %514 = vmatprep.subr.mxu0 0.0
        %515 = vmatpush1.msra.mxu0 0.0
        %516 = vmatprep.subr.mxu0 0.0
        %517 = vmatpush1.msra.mxu0 0.0
        %518 = vmatprep.subr.mxu0 0.0
        %519 = vmatpush1.msra.mxu0 0.0
        %520 = vmatprep.subr.mxu0 0.0
        %521 = vmatpush1.msra.mxu0 0.0
        %522 = vmatprep.subr.mxu0 0.0
        %523 = vmatpush1.msra.mxu0 0.0
        %524 = vmatprep.subr.mxu0 0.0
        %525 = vmatpush1.msra.mxu0 0.0
        %526 = vmatprep.subr.mxu0 0.0
        %527 = vmatpush1.msra.mxu0 0.0
        %528 = vmatprep.subr.mxu0 0.0
        %529 = vmatpush1.msra.mxu0 0.0
        %530 = vmatprep.subr.mxu0 0.0
        %531 = vmatpush1.msra.mxu0 0.0
        %532 = vmatprep.subr.mxu0 0.0
        %533 = vmatpush1.msra.mxu0 0.0
        %534 = vmatprep.subr.mxu0 0.0
        %535 = vmatpush1.msra.mxu0 0.0
        %536 = vmatprep.subr.mxu0 0.0
        %537 = vmatpush1.msra.mxu0 0.0
        %538 = vmatprep.subr.mxu0 0.0
        %539 = vmatpush1.msra.mxu0 0.0
        %540 = vmatprep.subr.mxu0 0.0
        %541 = vmatpush1.msra.mxu0 0.0
        %542 = vmatprep.mubr.f32.mxu0 0.0
        %543 = vmatmul.mubr.f32.gmra.mrb[0].mxu0 %v473
        %v544 = vpop.f32.mrb[0].mxu0
        %v545 = vadd.f32 %v415, %v544
        %v546 = vpop.f32.mrb[0].mxu0
        %547 = vdwg.mxu0
        %v548 = vadd.f32 %v545, 3.0
        %v549 = vmax.f32 %v548, 0.0
        %v550 = vmin.f32 %v549, 6.0
        %v551 = vmul.f32 %v545, %v550
        %v552 = vmul.f32 %v551, 0.16666667
        %554 = vset.pattern.permute.xlu0 0
        %555 = vperm.xlu0 %554, %v411
        %v556 = vpop.permute.xlu0 %555
        %vm558 = vcmask 64512
        %v560 = vsel %vm558, %v410, 0
        %562 = vmatprep.subr.mxu0 0.0
        %563 = vmatpush1.msra.mxu0 %v552
        %564 = vmatprep.subr.mxu0 0.0
        %565 = vmatpush1.msra.mxu0 0.0
        %566 = vmatprep.subr.mxu0 0.0
        %567 = vmatpush1.msra.mxu0 0.0
        %568 = vmatprep.subr.mxu0 0.0
        %569 = vmatpush1.msra.mxu0 0.0
        %570 = vmatprep.subr.mxu0 0.0
        %571 = vmatpush1.msra.mxu0 0.0
        %572 = vmatprep.subr.mxu0 0.0
        %573 = vmatpush1.msra.mxu0 0.0
        %574 = vmatprep.subr.mxu0 0.0
        %575 = vmatpush1.msra.mxu0 0.0
        %576 = vmatprep.subr.mxu0 0.0
        %577 = vmatpush1.msra.mxu0 0.0
        %578 = vmatprep.subr.mxu0 0.0
        %579 = vmatpush1.msra.mxu0 0.0
        %580 = vmatprep.subr.mxu0 0.0
        %581 = vmatpush1.msra.mxu0 0.0
        %582 = vmatprep.subr.mxu0 0.0
        %583 = vmatpush1.msra.mxu0 0.0
        %584 = vmatprep.subr.mxu0 0.0
        %585 = vmatpush1.msra.mxu0 0.0
        %586 = vmatprep.subr.mxu0 0.0
        %587 = vmatpush1.msra.mxu0 0.0
        %588 = vmatprep.subr.mxu0 0.0
        %589 = vmatpush1.msra.mxu0 0.0
        %590 = vmatprep.subr.mxu0 0.0
        %591 = vmatpush1.msra.mxu0 0.0
        %592 = vmatprep.subr.mxu0 0.0
        %593 = vmatpush1.msra.mxu0 0.0
        %594 = vmatprep.subr.mxu0 0.0
        %595 = vmatpush1.msra.mxu0 0.0
        %596 = vmatprep.subr.mxu0 0.0
        %597 = vmatpush1.msra.mxu0 0.0
        %598 = vmatprep.subr.mxu0 0.0
        %599 = vmatpush1.msra.mxu0 0.0
        %600 = vmatprep.subr.mxu0 0.0
        %601 = vmatpush1.msra.mxu0 0.0
        %602 = vmatprep.subr.mxu0 0.0
        %603 = vmatpush1.msra.mxu0 0.0
        %604 = vmatprep.subr.mxu0 0.0
        %605 = vmatpush1.msra.mxu0 0.0
        %606 = vmatprep.subr.mxu0 0.0
        %607 = vmatpush1.msra.mxu0 0.0
        %608 = vmatprep.subr.mxu0 0.0
        %609 = vmatpush1.msra.mxu0 0.0
        %610 = vmatprep.subr.mxu0 0.0
        %611 = vmatpush1.msra.mxu0 0.0
        %612 = vmatprep.subr.mxu0 0.0
        %613 = vmatpush1.msra.mxu0 0.0
        %614 = vmatprep.subr.mxu0 0.0
        %615 = vmatpush1.msra.mxu0 0.0
        %616 = vmatprep.subr.mxu0 0.0
        %617 = vmatpush1.msra.mxu0 0.0
        %618 = vmatprep.subr.mxu0 0.0
        %619 = vmatpush1.msra.mxu0 0.0
        %620 = vmatprep.subr.mxu0 0.0
        %621 = vmatpush1.msra.mxu0 0.0
        %622 = vmatprep.subr.mxu0 0.0
        %623 = vmatpush1.msra.mxu0 0.0
        %624 = vmatprep.subr.mxu0 0.0
        %625 = vmatpush1.msra.mxu0 0.0
        %626 = vmatprep.mubr.f32.mxu0 0.0
        %627 = vmatmul.mubr.f32.gmra.mrb[0].mxu0 %v560
        %v628 = vpop.f32.mrb[0].mxu0
        %v629 = vadd.f32 %v556, %v628
        %v630 = vpop.f32.mrb[0].mxu0
        %631 = vdwg.mxu0
        %v632 = vxor.u32 %v629, 2147483648
        %v633 = vmul.f32 %v632, 1.442695
        %v634 = vpow.pop %v633
        %v635 = vadd.f32 %v634, 1.0
        %v636 = vrcp.pop %v635
        %v637 = vmul.f32 1.0, %v636
        %vm638 = vcmask 125952
        %639 = vst.msk [vmem:[%s327] sm:$0xf] %vm638, %v637
        %v640 = vld [vmem:[%s5] sm:$0xf]
        %v641 = vld [vmem:[%s6] sm:$0xf]
        %v646 = vsel %vm465, %v405, %v404
        %v647 = vsel %vm467, %v406, %v646
        %v648 = vsel %vm469, %v407, %v647
        %v649 = vsel %vm475, %v648, 0
        %651 = vmatprep.subr.mxu0 0.0
        %652 = vmatpush1.msra.mxu0 %v649
        %653 = vmatprep.subr.mxu0 0.0
        %654 = vmatpush1.msra.mxu0 0.0
        %655 = vmatprep.subr.mxu0 0.0
        %656 = vmatpush1.msra.mxu0 0.0
        %657 = vmatprep.subr.mxu0 0.0
        %658 = vmatpush1.msra.mxu0 0.0
        %659 = vmatprep.subr.mxu0 0.0
        %660 = vmatpush1.msra.mxu0 0.0
        %661 = vmatprep.subr.mxu0 0.0
        %662 = vmatpush1.msra.mxu0 0.0
        %663 = vmatprep.subr.mxu0 0.0
        %664 = vmatpush1.msra.mxu0 0.0
        %665 = vmatprep.subr.mxu0 0.0
        %666 = vmatpush1.msra.mxu0 0.0
        %667 = vmatprep.subr.mxu0 0.0
        %668 = vmatpush1.msra.mxu0 0.0
        %669 = vmatprep.subr.mxu0 0.0
        %670 = vmatpush1.msra.mxu0 0.0
        %671 = vmatprep.subr.mxu0 0.0
        %672 = vmatpush1.msra.mxu0 0.0
        %673 = vmatprep.subr.mxu0 0.0
        %674 = vmatpush1.msra.mxu0 0.0
        %675 = vmatprep.subr.mxu0 0.0
        %676 = vmatpush1.msra.mxu0 0.0
        %677 = vmatprep.subr.mxu0 0.0
        %678 = vmatpush1.msra.mxu0 0.0
        %679 = vmatprep.subr.mxu0 0.0
        %680 = vmatpush1.msra.mxu0 0.0
        %681 = vmatprep.subr.mxu0 0.0
        %682 = vmatpush1.msra.mxu0 0.0
        %683 = vmatprep.subr.mxu0 0.0
        %684 = vmatpush1.msra.mxu0 0.0
        %685 = vmatprep.subr.mxu0 0.0
        %686 = vmatpush1.msra.mxu0 0.0
        %687 = vmatprep.subr.mxu0 0.0
        %688 = vmatpush1.msra.mxu0 0.0
        %689 = vmatprep.subr.mxu0 0.0
        %690 = vmatpush1.msra.mxu0 0.0
        %691 = vmatprep.subr.mxu0 0.0
        %692 = vmatpush1.msra.mxu0 0.0
        %693 = vmatprep.subr.mxu0 0.0
        %694 = vmatpush1.msra.mxu0 0.0
        %695 = vmatprep.subr.mxu0 0.0
        %696 = vmatpush1.msra.mxu0 0.0
        %697 = vmatprep.subr.mxu0 0.0
        %698 = vmatpush1.msra.mxu0 0.0
        %699 = vmatprep.subr.mxu0 0.0
        %700 = vmatpush1.msra.mxu0 0.0
        %701 = vmatprep.subr.mxu0 0.0
        %702 = vmatpush1.msra.mxu0 0.0
        %703 = vmatprep.subr.mxu0 0.0
        %704 = vmatpush1.msra.mxu0 0.0
        %705 = vmatprep.subr.mxu0 0.0
        %706 = vmatpush1.msra.mxu0 0.0
        %707 = vmatprep.subr.mxu0 0.0
        %708 = vmatpush1.msra.mxu0 0.0
        %709 = vmatprep.subr.mxu0 0.0
        %710 = vmatpush1.msra.mxu0 0.0
        %711 = vmatprep.subr.mxu0 0.0
        %712 = vmatpush1.msra.mxu0 0.0
        %713 = vmatprep.subr.mxu0 0.0
        %714 = vmatpush1.msra.mxu0 0.0
        %715 = vmatprep.mubr.f32.mxu0 0.0
        %716 = vmatmul.mubr.f32.gmra.mrb[0].mxu0 %v473
        %v717 = vpop.f32.mrb[0].mxu0
        %v718 = vadd.f32 %v415, %v717
        %v719 = vpop.f32.mrb[0].mxu0
        %720 = vdwg.mxu0
        %v721 = vadd.f32 %v718, 3.0
        %v722 = vmax.f32 %v721, 0.0
        %v723 = vmin.f32 %v722, 6.0
        %v724 = vmul.f32 %v718, %v723
        %v725 = vmul.f32 %v724, 0.16666667
        %727 = vset.pattern.permute.xlu0 0
        %728 = vperm.xlu0 %727, %v641
        %v729 = vpop.permute.xlu0 %728
        %v732 = vsel %vm558, %v640, 0
        %734 = vmatprep.subr.mxu0 0.0
        %735 = vmatpush1.msra.mxu0 %v725
        %736 = vmatprep.subr.mxu0 0.0
        %737 = vmatpush1.msra.mxu0 0.0
        %738 = vmatprep.subr.mxu0 0.0
        %739 = vmatpush1.msra.mxu0 0.0
        %740 = vmatprep.subr.mxu0 0.0
        %741 = vmatpush1.msra.mxu0 0.0
        %742 = vmatprep.subr.mxu0 0.0
        %743 = vmatpush1.msra.mxu0 0.0
        %744 = vmatprep.subr.mxu0 0.0
        %745 = vmatpush1.msra.mxu0 0.0
        %746 = vmatprep.subr.mxu0 0.0
        %747 = vmatpush1.msra.mxu0 0.0
        %748 = vmatprep.subr.mxu0 0.0
        %749 = vmatpush1.msra.mxu0 0.0
        %750 = vmatprep.subr.mxu0 0.0
        %751 = vmatpush1.msra.mxu0 0.0
        %752 = vmatprep.subr.mxu0 0.0
        %753 = vmatpush1.msra.mxu0 0.0
        %754 = vmatprep.subr.mxu0 0.0
        %755 = vmatpush1.msra.mxu0 0.0
        %756 = vmatprep.subr.mxu0 0.0
        %757 = vmatpush1.msra.mxu0 0.0
        %758 = vmatprep.subr.mxu0 0.0
        %759 = vmatpush1.msra.mxu0 0.0
        %760 = vmatprep.subr.mxu0 0.0
        %761 = vmatpush1.msra.mxu0 0.0
        %762 = vmatprep.subr.mxu0 0.0
        %763 = vmatpush1.msra.mxu0 0.0
        %764 = vmatprep.subr.mxu0 0.0
        %765 = vmatpush1.msra.mxu0 0.0
        %766 = vmatprep.subr.mxu0 0.0
        %767 = vmatpush1.msra.mxu0 0.0
        %768 = vmatprep.subr.mxu0 0.0
        %769 = vmatpush1.msra.mxu0 0.0
        %770 = vmatprep.subr.mxu0 0.0
        %771 = vmatpush1.msra.mxu0 0.0
        %772 = vmatprep.subr.mxu0 0.0
        %773 = vmatpush1.msra.mxu0 0.0
        %774 = vmatprep.subr.mxu0 0.0
        %775 = vmatpush1.msra.mxu0 0.0
        %776 = vmatprep.subr.mxu0 0.0
        %777 = vmatpush1.msra.mxu0 0.0
        %778 = vmatprep.subr.mxu0 0.0
        %779 = vmatpush1.msra.mxu0 0.0
        %780 = vmatprep.subr.mxu0 0.0
        %781 = vmatpush1.msra.mxu0 0.0
        %782 = vmatprep.subr.mxu0 0.0
        %783 = vmatpush1.msra.mxu0 0.0
        %784 = vmatprep.subr.mxu0 0.0
        %785 = vmatpush1.msra.mxu0 0.0
        %786 = vmatprep.subr.mxu0 0.0
        %787 = vmatpush1.msra.mxu0 0.0
        %788 = vmatprep.subr.mxu0 0.0
        %789 = vmatpush1.msra.mxu0 0.0
        %790 = vmatprep.subr.mxu0 0.0
        %791 = vmatpush1.msra.mxu0 0.0
        %792 = vmatprep.subr.mxu0 0.0
        %793 = vmatpush1.msra.mxu0 0.0
        %794 = vmatprep.subr.mxu0 0.0
        %795 = vmatpush1.msra.mxu0 0.0
        %796 = vmatprep.subr.mxu0 0.0
        %797 = vmatpush1.msra.mxu0 0.0
        %798 = vmatprep.mubr.f32.mxu0 0.0
        %799 = vmatmul.mubr.f32.gmra.mrb[0].mxu0 %v732
        %v800 = vpop.f32.mrb[0].mxu0
        %v801 = vadd.f32 %v729, %v800
        %v802 = vpop.f32.mrb[0].mxu0
        %803 = vdwg.mxu0
        %v804 = vxor.u32 %v801, 2147483648
        %v805 = vmul.f32 %v804, 1.442695
        %v806 = vpow.pop %v805
        %v807 = vadd.f32 %v806, 1.0
        %v808 = vrcp.pop %v807
        %v809 = vmul.f32 1.0, %v808
        %810 = vst.msk [vmem:[%s334] sm:$0xf] %vm638, %v809
        %s811 = sand.u32 %s189, 1
        %s812 = scalar_lea.sflag [#allocation4], %s811
        %s813 = sand.u32 %s189, 1
        %s814 = smul.addr %s813, 4
        %s815 = scalar_lea.vmem [#allocation5], %s814
        %s816 = sand.u32 %s215, 1
        %s817 = scalar_lea.sflag [#allocation7], %s816
        %s818 = sand.u32 %s215, 1
        %s819 = smul.addr %s818, 4
        %s820 = scalar_lea.vmem [#allocation6], %s819
        // Predicated region
        $region53: #{tpu_custom_call.1} parent=47 // pred_check
          %p821 = pneg %p199
        $region54: #{tpu_custom_call.1} parent=47 // pred_check_branch
          %823 = sbr.rel (%p821) target = $region56
        $region55: #{tpu_custom_call.1} parent=47 // pred_region
          %s825 = ssub.s32 64, 64
          %826 = vsyncadd %s812, %s825
          %s827 = smul.addr %s29, 64
          %s828 = scalar_lea.hbm %s7, %s827
          %s830 = sshll.u32 %s815, 4
          %s831 = int_to_ptr.vmem [resolvable:$true] %s830
          %833 = dma.vmem_to_hbm [thread:$0]  %s831, 64, %s828, %s812
        $region56: #{tpu_custom_call.1} parent=47 // pred_fallthru
          _
        // Predicated region
        $region57: #{tpu_custom_call.1} parent=47 // pred_check
          %p834 = pneg %p225
        $region58: #{tpu_custom_call.1} parent=47 // pred_check_branch
          %836 = sbr.rel (%p834) target = $region60
        $region59: #{tpu_custom_call.1} parent=47 // pred_region
          %s838 = ssub.s32 64, 64
          %839 = vsyncadd %s817, %s838
          %s840 = smul.addr %s29, 64
          %s841 = scalar_lea.hbm %s8, %s840
          %s843 = sshll.u32 %s820, 4
          %s844 = int_to_ptr.vmem [resolvable:$true] %s843
          %846 = dma.vmem_to_hbm [thread:$0]  %s844, 64, %s841, %s817
        $region60: #{tpu_custom_call.1} parent=47 // pred_fallthru
          _
      $region48: #{tpu_custom_call.1} parent=5 // pred_fallthru
        _
      %p847 = scmp.le.s32.totalorder 2, %s24
      // Predicated region
      $region61: #{tpu_custom_call.1} parent=5 // pred_check
        %p848 = pneg %p847
      $region62: #{tpu_custom_call.1} parent=5 // pred_check_branch
        %850 = sbr.rel (%p848) target = $region64
      $region63: #{tpu_custom_call.1} parent=5 // pred_region
        %s851 = ssub.s32 %s24, 2
        // Predicated region
        $region65: #{tpu_custom_call.1} parent=63 // pred_check
          %p852 = pneg %p205
        $region66: #{tpu_custom_call.1} parent=63 // pred_check_branch
          %854 = sbr.rel (%p852) target = $region68
        $region67: #{tpu_custom_call.1} parent=63 // pred_region
          %s855 = sand.u32 %s190, 1
          %s856 = scalar_lea.sflag [#allocation4], %s855
          %s857 = sand.u32 %s190, 1
          %s858 = smul.addr %s857, 4
          %s859 = scalar_lea.vmem [#allocation5], %s858
          %860 = dma.done %s856, 64
        $region68: #{tpu_custom_call.1} parent=63 // pred_fallthru
          _
        // Predicated region
        $region69: #{tpu_custom_call.1} parent=63 // pred_check
          %p861 = pneg %p231
        $region70: #{tpu_custom_call.1} parent=63 // pred_check_branch
          %863 = sbr.rel (%p861) target = $region72
        $region71: #{tpu_custom_call.1} parent=63 // pred_region
          %s864 = sand.u32 %s216, 1
          %s865 = scalar_lea.sflag [#allocation7], %s864
          %s866 = sand.u32 %s216, 1
          %s867 = smul.addr %s866, 4
          %s868 = scalar_lea.vmem [#allocation6], %s867
          %869 = dma.done %s865, 64
        $region72: #{tpu_custom_call.1} parent=63 // pred_fallthru
          _
      $region64: #{tpu_custom_call.1} parent=5 // pred_fallthru
        _
    $region6: #{tpu_custom_call.1} parent=1 // loop_footer
      %s28 = sadd.s32 1, %s24
    $region7: #{tpu_custom_call.1} parent=1 // loop_footer_branch
      %23 = sbr.rel target = $region3
    $region8: #{tpu_custom_call.1} parent=1 // loop_exit
      _
    %870 = vsyncpa [#allocation3], 1
    %s871 = scalar_lea.sflag [#allocation3], 1
    %872 = vsyncpa %s871, 1
    %873 = vsyncpa [#allocation4], 1
    %s874 = scalar_lea.sflag [#allocation4], 1
    %875 = vsyncpa %s874, 1
    %876 = vsyncpa [#allocation7], 1
    %s877 = scalar_lea.sflag [#allocation7], 1
    %878 = vsyncpa %s877, 1

</llo_original>
